<compile_context>
chip_gen: v6e
topology: v6e:2x2x1
jax: 0.10.0
libtpu: 0.0.40
codegen_flags: <defaults>
</compile_context>

<pallas_src>
import jax
import jax.numpy as jnp
from jax.experimental import pallas as pl
from jax.experimental.pallas import tpu as pltpu

LANES = 128          # vreg lane width: last dim of every tile
TILE_ROWS = 8192     # (8192, 128) f32 tile = 4 MiB; 2 in + 2 out buffers = 16 MiB


def _round_up(a, m):
    return ((a + m - 1) // m) * m


def linreg_kernel(w_ref, b_ref, x_ref, o_ref):
    # w_ref, b_ref: (1,) f32 scalars in SMEM
    # x_ref: (tr, 128) tile in native input dtype; o_ref: (tr, 128) f32 tile
    x = x_ref[...].astype(jnp.float32)     # in-register upcast (free on VPU)
    o_ref[...] = x * w_ref[0] + b_ref[0]


def _row_axis_semantics():
    # CORE_PARALLEL shards row tiles across both TensorCores on v7x; plain
    # PARALLEL on single-TC v5e/v6e (parallel vs arbitrary is codegen-neutral).
    try:
        kind = jax.devices()[0].device_kind.lower()
    except Exception:
        kind = ""
    if "v7" in kind:
        return (pltpu.CORE_PARALLEL,)
    return (pltpu.PARALLEL,)


def linear_regression(x, weight, bias, tile_rows=TILE_ROWS):
    """x: (N, 1), weight: (1, 1), bias: (1,) -> (N, 1) f32; y = x * w + b."""
    n = x.shape[0]

    # Stream 16-bit inputs natively (halves input HBM bytes); everything else f32.
    if x.dtype not in (jnp.float32, jnp.bfloat16, jnp.float16):
        x = x.astype(jnp.float32)
    sublane = 16 if x.dtype in (jnp.bfloat16, jnp.float16) else 8

    w = weight.reshape(1).astype(jnp.float32)
    b = bias.reshape(1).astype(jnp.float32)

    # Lane-dense layout: (N, 1) -> (rows, 128).  Fast path avoids pad + slice
    # (two full HBM passes) when N is already a multiple of 128.
    aligned = (n % LANES) == 0
    rows = (n // LANES) if aligned else pl.cdiv(n, LANES)
    if aligned:
        x2d = x.reshape(rows, LANES)                       # metadata-only reshape
    else:
        flat = x.reshape(-1)
        flat = jnp.pad(flat, (0, rows * LANES - n))        # pad only to lane boundary
        x2d = flat.reshape(rows, LANES)

    tr = tile_rows if rows >= tile_rows else _round_up(rows, sublane)
    grid = (pl.cdiv(rows, tr),)   # Pallas masks the partial boundary tile

    total = rows * LANES
    cost = pl.CostEstimate(
        flops=2 * total,
        transcendentals=0,
        bytes_accessed=total * (x2d.dtype.itemsize + 4) + 8,
    )

    # NOTE: if a v7x profile still shows exposed DMA at tile boundaries, bump
    # the x / out BlockSpecs to pipeline_mode=pl.Buffered(3).
    y2d = pl.pallas_call(
        linreg_kernel,
        out_shape=jax.ShapeDtypeStruct((rows, LANES), jnp.float32),
        grid=grid,
        in_specs=[
            pl.BlockSpec(memory_space=pltpu.SMEM),          # weight scalar
            pl.BlockSpec(memory_space=pltpu.SMEM),          # bias scalar
            pl.BlockSpec((tr, LANES), lambda i: (i, 0)),    # x row-tile
        ],
        out_specs=pl.BlockSpec((tr, LANES), lambda i: (i, 0)),
        compiler_params=pltpu.CompilerParams(
            dimension_semantics=_row_axis_semantics(),
            vmem_limit_bytes=32 << 20,   # room for 16 MiB of double buffers on v5e
        ),
        cost_estimate=cost,
    )(w, b, x2d)

    if aligned:
        return y2d.reshape(n, 1)                 # no copy, no slice
    return y2d.reshape(-1)[:n].reshape(n, 1)     # drop lane padding


if __name__ == "__main__":
    key = jax.random.PRNGKey(0)
    k_x1, k_x2, k_x3, k_w, k_b = jax.random.split(key, 5)

    # Deterministic parameter init (mimics torch's uniform(-1, 1) for fan_in=1).
    weight = jax.random.uniform(k_w, (1, 1), minval=-1.0, maxval=1.0, dtype=jnp.float32)
    bias = jax.random.uniform(k_b, (1,), minval=-1.0, maxval=1.0, dtype=jnp.float32)

    def ref(xv):
        return xv.astype(jnp.float32) @ weight.T + bias

    # 1) Unaligned N: pad-to-lane path, single partial tile.
    n1 = 2065
    x1 = jax.random.normal(k_x1, (n1, 1), dtype=jnp.float32)
    y1 = linear_regression(x1, weight, bias)
    jax.block_until_ready(y1)
    assert y1.shape == (n1, 1)
    assert jnp.allclose(y1, ref(x1), atol=1e-6), "mismatch vs reference (unaligned)"

    # 2) Lane-aligned N: fast path with zero extra HBM passes (no pad, no slice).
    n2 = 4096
    x2 = jax.random.normal(k_x2, (n2, 1), dtype=jnp.float32)
    y2 = linear_regression(x2, weight, bias)
    jax.block_until_ready(y2)
    assert y2.shape == (n2, 1)
    assert jnp.allclose(y2, ref(x2), atol=1e-6), "mismatch vs reference (aligned)"

    # 3) Multi-tile grid with a partial boundary tile (small tile_rows to
    #    exercise the double-buffered streaming loop at small N).
    y3 = linear_regression(x1, weight, bias, tile_rows=8)
    jax.block_until_ready(y3)
    assert jnp.allclose(y3, ref(x1), atol=1e-6), "mismatch vs reference (multi-tile)"

    # 4) Native bf16 input streamed through the kernel (upcast in-register).
    n4 = 512
    x4 = jax.random.normal(k_x3, (n4, 1), dtype=jnp.float32).astype(jnp.bfloat16)
    y4 = linear_regression(x4, weight, bias)
    jax.block_until_ready(y4)
    assert y4.shape == (n4, 1) and y4.dtype == jnp.float32
    assert jnp.allclose(y4, ref(x4), atol=2e-2, rtol=2e-2), "mismatch vs reference (bf16)"

    print("KERNEL_OK")
</pallas_src>

<mosaic_0001>
module attributes {stable_mosaic.version = 11 : i64} {
  func.func @linreg_kernel(%arg0: i32, %arg1: memref<1xf32, #tpu.memory_space<smem>>, %arg2: memref<1xf32, #tpu.memory_space<smem>>, %arg3: memref<24x128xf32, #tpu.memory_space<vmem>>, %arg4: memref<24x128xf32, #tpu.memory_space<vmem>>) attributes {dimension_semantics = [#tpu.dimension_semantics<parallel>], iteration_bounds = array<i64: 1>, scalar_prefetch = 0 : i64, scratch_operands = 0 : i64, tpu.core_type = #tpu.core_type<tc>, window_params = [{transform_indices = @transform_0, window_bounds = array<i64: 1>}, {transform_indices = @transform_1, window_bounds = array<i64: 1>}, {transform_indices = @transform_2, window_bounds = array<i64: 24, 128>}, {transform_indices = @transform_3, window_bounds = array<i64: 24, 128>}]} {
    %c0 = arith.constant 0 : index
    %c0_0 = arith.constant 0 : index
    %0 = vector.load %arg3[%c0, %c0_0] : memref<24x128xf32, #tpu.memory_space<vmem>>, vector<24x128xf32>
    %c0_1 = arith.constant 0 : index
    %1 = memref.load %arg1[%c0_1] : memref<1xf32, #tpu.memory_space<smem>>
    %2 = vector.broadcast %1 : f32 to vector<24x128xf32>
    %3 = arith.mulf %0, %2 : vector<24x128xf32>
    %c0_2 = arith.constant 0 : index
    %4 = memref.load %arg2[%c0_2] : memref<1xf32, #tpu.memory_space<smem>>
    %5 = vector.broadcast %4 : f32 to vector<24x128xf32>
    %6 = arith.addf %3, %5 : vector<24x128xf32>
    %c0_3 = arith.constant 0 : index
    %c0_4 = arith.constant 0 : index
    %7 = vector.load %arg4[%c0_3, %c0_4] : memref<24x128xf32, #tpu.memory_space<vmem>>, vector<24x128xf32>
    tpu.vector_store %arg4[%c0_3, %c0_4], %6 {strides = array<i32>} : memref<24x128xf32, #tpu.memory_space<vmem>>, vector<24x128xf32>,
    return
  }
  func.func @transform_0(%arg0: i32) -> i32 {
    %c0_i32 = arith.constant 0 : i32
    %c0_i32_0 = arith.constant 0 : i32
    return %c0_i32 : i32
  }
  func.func @transform_1(%arg0: i32) -> i32 {
    %c0_i32 = arith.constant 0 : i32
    %c0_i32_0 = arith.constant 0 : i32
    return %c0_i32 : i32
  }
  func.func @transform_2(%arg0: i32) -> (i32, i32) {
    %c0_i32 = arith.constant 0 : i32
    %c0_i32_0 = arith.constant 0 : i32
    return %arg0, %c0_i32 : i32, i32
  }
  func.func @transform_3(%arg0: i32) -> (i32, i32) {
    %c0_i32 = arith.constant 0 : i32
    %c0_i32_0 = arith.constant 0 : i32
    return %arg0, %c0_i32 : i32, i32
  }
}

</mosaic_0001>

<llo_original>
// kernel: tpu_custom_call.1
$region0: #{tpu_custom_call.1}
  #allocation0 [shape = 'u32[]', space=smem, size = 0x4, offset = 0x4, fixed_abs, tag = 'smem constant byte address 0x4 - core index']
  #allocation1 [shape = 'u32[144,128]{1,0:T(1,128)}', space=vmem, size = 0x12000, scoped, tag = 'internal scratch']
  #allocation2 [shape = 'f32[1]{0:T(128)S(6)}', space=smem, size = 0x200, scoped, tag = 'scoped memory for tpu_custom_call.1']
  #allocation3 [shape = 'f32[1]{0:T(128)S(6)}', space=smem, size = 0x200, scoped, tag = 'scoped memory for tpu_custom_call.1']
  %s0 = inlined_call_operand.<no memory space> [shape: f32[1], index: 0, kind: input, shape index: {}]
  %s1 = inlined_call_operand.<no memory space> [shape: f32[1], index: 1, kind: input, shape index: {}]
  %s2 = inlined_call_operand.hbm [shape: f32[17,128], index: 2, kind: input, shape index: {}]
  %s3 = inlined_call_operand.hbm [shape: f32[17,128], index: 3, kind: output, shape index: {}]
  %s4 = sld [smem:[#allocation0]]
  $region26: #{tpu_custom_call.1} parent=0
    _
  %s6 = ssub.s32 1, %s4
  %s7 = scalar_select 0, %s6, %s4
  %8 = sst [smem:[#allocation2]] %s0
  %9 = sst [smem:[#allocation3]] %s1
  $region1: #{tpu_custom_call.1} parent=0
    #allocation4 [shape = 'u8[12288]{0}', space=vmem, size = 0x3000, scoped, tag = 'input window, operand 2, single buffered']
    #allocation5 [shape = 's32[1]{0}', space=sflag, size = 0x4, scoped, tag = 'scoped memory for tpu_custom_call.1']
    #allocation6 [shape = 's32[1]{0}', space=sflag, size = 0x4, scoped, tag = 'scoped memory for tpu_custom_call.1']
    #allocation7 [shape = 'u8[12288]{0}', space=vmem, size = 0x3000, scoped, tag = 'output window, operand 0, single buffered']
    %10 = vsyncpa [#allocation5], 0
    %11 = vsyncpa [#allocation6], 0
    // Predicated region
    $region2: #{tpu_custom_call.1} parent=1 // pred_check
      _
    $region3: #{tpu_custom_call.1} parent=1 // pred_check_branch
      %13 = sbr.rel (0) target = $region5
    $region4: #{tpu_custom_call.1} parent=1 // pred_region
      _
    $region5: #{tpu_custom_call.1} parent=1 // pred_fallthru
      _
    // Predicated region
    $region6: #{tpu_custom_call.1} parent=1 // pred_check
      _
    $region7: #{tpu_custom_call.1} parent=1 // pred_check_branch
      %15 = sbr.rel (0) target = $region9
    $region8: #{tpu_custom_call.1} parent=1 // pred_region
      _
    $region9: #{tpu_custom_call.1} parent=1 // pred_fallthru
      _
    // Predicated region
    $region10: #{tpu_custom_call.1} parent=1 // pred_check
      _
    $region11: #{tpu_custom_call.1} parent=1 // pred_check_branch
      %17 = sbr.rel (0) target = $region13
    $region12: #{tpu_custom_call.1} parent=1 // pred_region
      %s19 = ssub.s32 384, 384
      %20 = vsyncadd [#allocation5], %s19
      %s21 = sshll.u32 [#allocation4], 4
      %s22 = int_to_ptr.vmem [resolvable:$true] %s21
      %27 = dma.hbm_to_vmem [thread:$0]  %s2, 384, %s22, [#allocation5], 128, 128, 8
    $region13: #{tpu_custom_call.1} parent=1 // pred_fallthru
      _
    // Predicated region
    $region14: #{tpu_custom_call.1} parent=1 // pred_check
      _
    $region15: #{tpu_custom_call.1} parent=1 // pred_check_branch
      %29 = sbr.rel (0) target = $region17
    $region16: #{tpu_custom_call.1} parent=1 // pred_region
      %30 = dma.done [#allocation5], 384
    $region17: #{tpu_custom_call.1} parent=1 // pred_fallthru
      _
    %v31 = vld [vmem:[#allocation4] sm:$0xff]
    %v32 = vld [vmem:[#allocation4 + $0x8] sm:$0xff]
    %v33 = vld [vmem:[#allocation4 + $0x10] sm:$0xff]
    %s34 = sld [smem:[#allocation2]]
    %v35 = vstv %s34
    %v36 = vmul.f32 %v31, %v35
    %v37 = vmul.f32 %v32, %v35
    %v38 = vmul.f32 %v33, %v35
    %s39 = sld [smem:[#allocation3]]
    %v40 = vstv %s39
    %v41 = vadd.f32 %v36, %v40
    %v42 = vadd.f32 %v37, %v40
    %v43 = vadd.f32 %v38, %v40
    %44 = vst [vmem:[#allocation7] sm:$0xff] %v41
    %45 = vst [vmem:[#allocation7 + $0x8] sm:$0xff] %v42
    %46 = vst [vmem:[#allocation7 + $0x10] sm:$0xff] %v43
    // Predicated region
    $region18: #{tpu_custom_call.1} parent=1 // pred_check
      _
    $region19: #{tpu_custom_call.1} parent=1 // pred_check_branch
      %48 = sbr.rel (0) target = $region21
    $region20: #{tpu_custom_call.1} parent=1 // pred_region
      %s50 = ssub.s32 384, 384
      %51 = vsyncadd [#allocation6], %s50
      %s52 = sshll.u32 [#allocation7], 4
      %s53 = int_to_ptr.vmem [resolvable:$true] %s52
      %58 = dma.vmem_to_hbm [thread:$0]  %s53, 384, %s3, [#allocation6], 128, 128, 8
    $region21: #{tpu_custom_call.1} parent=1 // pred_fallthru
      _
    // Predicated region
    $region22: #{tpu_custom_call.1} parent=1 // pred_check
      _
    $region23: #{tpu_custom_call.1} parent=1 // pred_check_branch
      %60 = sbr.rel (0) target = $region25
    $region24: #{tpu_custom_call.1} parent=1 // pred_region
      %61 = dma.done [#allocation6], 384
    $region25: #{tpu_custom_call.1} parent=1 // pred_fallthru
      _
    %62 = vsyncpa [#allocation5], 1
    %63 = vsyncpa [#allocation6], 1

</llo_original>
